<compile_context>
chip_gen: v5e
topology: v5e:2x2
jax: 0.10.0
libtpu: 0.0.40
codegen_flags: <defaults>
</compile_context>

<pallas_src>
import functools

import jax
import jax.numpy as jnp
from jax.experimental import pallas as pl
from jax.experimental.pallas import tpu as pltpu

_LANE = 128                         # lane width (fixed)
_STRIP = 128                        # rows per inner strip (16 f32 vregs / value)
_TARGET_BLK_BYTES = 2 * 1024 * 1024  # ~2 MiB of input per buffer per grid step
_NSPLIT = 2                         # parallel axis (2 TCs on v7x; serial elsewhere)


def _dice_bce_partial_kernel(x_ref, t_ref, acc_ref, *,
                             blk_rows, strip_rows, nstrips, rows_total,
                             has_tail, binary_targets):
    c = pl.program_id(0)            # split (parallel axis)
    s = pl.program_id(1)            # step within split (arbitrary axis)

    @pl.when(s == 0)
    def _init():
        acc_ref[...] = jnp.zeros_like(acc_ref)

    # Logical (unclamped) block id -> global row offset (used only for masking).
    blk = c * pl.num_programs(1) + s
    row_start = blk * blk_rows
    g = strip_rows // 8

    def strip_sums(x, t):
        # x, t: (strip_rows, 128) float32
        if binary_targets:
            # One log / element: BCE reduces to -log(x) if t==1 else -log(1-x).
            nbce = jnp.maximum(jnp.log(jnp.where(t > 0.5, x, 1.0 - x)), -100.0)
        else:
            # PyTorch binary_cross_entropy clamps log terms at -100 (0*log0 -> 0).
            log_p = jnp.maximum(jnp.log(x), -100.0)
            log_1mp = jnp.maximum(jnp.log(1.0 - x), -100.0)
            nbce = t * (log_p - log_1mp) + log_1mp   # = -(elementwise BCE)
        # Tree-reduce each strip to one (8, 128) vreg (sublane-group reshape,
        # VALU adds only, no cross-lane movement).
        p_int = jnp.sum((x * t).reshape(g, 8, _LANE), axis=0)
        p_sum = jnp.sum((x + t).reshape(g, 8, _LANE), axis=0)
        p_bce = jnp.sum(nbce.reshape(g, 8, _LANE), axis=0)
        return p_int, p_sum, p_bce

    def accumulate(masked):
        def body(i, carry):
            a_int, a_sum, a_bce = carry
            r0 = pl.multiple_of(i * strip_rows, strip_rows)
            x = x_ref[pl.ds(r0, strip_rows), :].astype(jnp.float32)
            t = t_ref[pl.ds(r0, strip_rows), :].astype(jnp.float32)
            if masked:
                rid = (row_start + r0 +
                       jax.lax.broadcasted_iota(jnp.int32, (strip_rows, 1), 0))
                valid = rid < rows_total            # broadcasts over lanes
                # Zero invalid rows BEFORE any arithmetic; (x=0, t=0) elements
                # contribute exactly 0 to every partial sum (incl. clamped BCE).
                x = jnp.where(valid, x, 0.0)
                t = jnp.where(valid, t, 0.0)
            p_int, p_sum, p_bce = strip_sums(x, t)
            return a_int + p_int, a_sum + p_sum, a_bce + p_bce

        zero = jnp.zeros((8, _LANE), jnp.float32)
        a_int, a_sum, a_bce = jax.lax.fori_loop(
            0, nstrips, body, (zero, zero, zero), unroll=min(4, nstrips))
        # One small read-modify-write per grid step, not per strip.
        acc_ref[0, 0] += a_int
        acc_ref[0, 1] += a_sum
        acc_ref[0, 2] += a_bce

    if has_tail:
        needs_mask = row_start + blk_rows > rows_total

        @pl.when(needs_mask)
        def _masked():
            accumulate(masked=True)

        @pl.when(jnp.logical_not(needs_mask))
        def _fast():
            accumulate(masked=False)
    else:
        accumulate(masked=False)


def _partial_sums_xla(x, t, binary_targets):
    """Plain-XLA partial sums for the tiny (<1024 element) remainder."""
    x = x.astype(jnp.float32)
    t = t.astype(jnp.float32)
    if binary_targets:
        nbce = jnp.maximum(jnp.log(jnp.where(t > 0.5, x, 1.0 - x)), -100.0)
    else:
        log_p = jnp.maximum(jnp.log(x), -100.0)
        log_1mp = jnp.maximum(jnp.log(1.0 - x), -100.0)
        nbce = t * (log_p - log_1mp) + log_1mp
    return jnp.sum(x * t), jnp.sum(x + t), jnp.sum(nbce)


def dice_bce_loss(inputs, targets, *, eps=1.0, alpha=0.5, binary_targets=False):
    """Pallas TPU implementation of DiceBCELoss.forward (scalar output)."""
    assert inputs.shape == targets.shape
    n_elems = inputs.size

    x = inputs.reshape(-1)
    t = targets.reshape(-1)

    min_tile = 8 * _LANE
    main = (n_elems // min_tile) * min_tile   # part handled by the kernel

    intersection = jnp.float32(0.0)
    sum_x_plus_t = jnp.float32(0.0)
    neg_bce_sum = jnp.float32(0.0)

    if main < n_elems:
        # Rare path: reduce the sub-1024-element remainder in plain XLA instead
        # of padding / copying the whole input.
        ri, rs, rb = _partial_sums_xla(x[main:], t[main:], binary_targets)
        intersection += ri
        sum_x_plus_t += rs
        neg_bce_sum += rb

    if main > 0:
        rows = main // _LANE                              # multiple of 8
        xm = x if main == n_elems else x[:main]
        tm = t if main == n_elems else t[:main]
        x2 = xm.reshape(rows, _LANE)                      # free on common path
        t2 = tm.reshape(rows, _LANE)

        # Dtype-scaled block: ~2 MiB per input buffer, always a multiple of the
        # strip size (so also a multiple of 16 for bf16 sublane packing).
        itemsize = jnp.dtype(inputs.dtype).itemsize
        blk_max = max(_STRIP,
                      (_TARGET_BLK_BYTES // (_LANE * itemsize)) // _STRIP * _STRIP)
        if rows < _STRIP:
            blk_rows = rows            # equals full row dim -> always legal
            strip_rows = rows
        else:
            blk_rows = min(blk_max, (rows // _STRIP) * _STRIP)
            strip_rows = _STRIP
        nstrips = blk_rows // strip_rows
        nblocks = pl.cdiv(rows, blk_rows)
        nsplit = _NSPLIT if nblocks >= _NSPLIT else 1
        steps = pl.cdiv(nblocks, nsplit)
        has_tail = (rows % blk_rows != 0) or (nblocks % nsplit != 0)

        def in_map(c, s):
            # Clamp out-of-range steps to the last valid block; the in-kernel
            # row mask (based on the unclamped block id) zeroes their output.
            return (jnp.minimum(c * steps + s, nblocks - 1), 0)

        kernel = functools.partial(
            _dice_bce_partial_kernel,
            blk_rows=blk_rows, strip_rows=strip_rows, nstrips=nstrips,
            rows_total=rows, has_tail=has_tail, binary_targets=binary_targets)

        partials = pl.pallas_call(
            kernel,
            out_shape=jax.ShapeDtypeStruct((nsplit, 3, 8, _LANE), jnp.float32),
            grid_spec=pltpu.PrefetchScalarGridSpec(
                num_scalar_prefetch=0,
                grid=(nsplit, steps),
                in_specs=[
                    pl.BlockSpec((blk_rows, _LANE), in_map),
                    pl.BlockSpec((blk_rows, _LANE), in_map),
                ],
                out_specs=pl.BlockSpec((1, 3, 8, _LANE),
                                       lambda c, s: (c, 0, 0, 0)),
            ),
            compiler_params=pltpu.CompilerParams(
                dimension_semantics=("parallel", "arbitrary"),
            ),
        )(x2, t2)

        intersection += jnp.sum(partials[:, 0])
        sum_x_plus_t += jnp.sum(partials[:, 1])
        neg_bce_sum += jnp.sum(partials[:, 2])

    dice = (2.0 * intersection + eps) / (sum_x_plus_t + eps)
    dice_loss = 1.0 - dice
    bce_mean = -neg_bce_sum / n_elems
    return alpha * bce_mean + (1.0 - alpha) * dice_loss


def _reference_dice_bce(inputs, targets, eps=1.0, alpha=0.5):
    x = inputs.astype(jnp.float32)
    t = targets.astype(jnp.float32)
    intersection = jnp.sum(x * t)
    dice = (2.0 * intersection + eps) / (jnp.sum(x) + jnp.sum(t) + eps)
    dice_loss = 1.0 - dice
    log_p = jnp.maximum(jnp.log(x), -100.0)
    log_1mp = jnp.maximum(jnp.log(1.0 - x), -100.0)
    bce = jnp.mean(-(t * log_p + (1.0 - t) * log_1mp))
    return alpha * bce + (1.0 - alpha) * dice_loss


if __name__ == "__main__":
    key = jax.random.PRNGKey(0)
    k1, k2 = jax.random.split(key)

    # NCHW probability map, as produced by e.g. sigmoid(conv output)
    shape = (2, 4, 16, 16)
    inputs = jax.nn.sigmoid(jax.random.normal(k1, shape, dtype=jnp.float32))
    targets = (jax.random.uniform(k2, shape) > 0.5).astype(jnp.float32)

    ref = _reference_dice_bce(inputs, targets, eps=1.0, alpha=0.5)

    loss = dice_bce_loss(inputs, targets, eps=1.0, alpha=0.5)
    loss = jax.block_until_ready(loss)
    assert jnp.allclose(loss, ref, rtol=1e-5, atol=1e-5), (loss, ref)

    # Optional one-log fast path (valid here since targets are {0,1}).
    loss_bin = dice_bce_loss(inputs, targets, eps=1.0, alpha=0.5,
                             binary_targets=True)
    loss_bin = jax.block_until_ready(loss_bin)
    assert jnp.allclose(loss_bin, ref, rtol=1e-5, atol=1e-5), (loss_bin, ref)

    print("KERNEL_OK")
</pallas_src>

<mosaic_0001>
module attributes {stable_mosaic.version = 11 : i64} {
  func.func @_dice_bce_partial_kernel(%arg0: i32, %arg1: i32, %arg2: memref<16x128xf32, #tpu.memory_space<vmem>>, %arg3: memref<16x128xf32, #tpu.memory_space<vmem>>, %arg4: memref<1x3x8x128xf32, #tpu.memory_space<vmem>>) attributes {dimension_semantics = [#tpu.dimension_semantics<parallel>, #tpu.dimension_semantics<arbitrary>], iteration_bounds = array<i64: 1, 1>, scalar_prefetch = 0 : i64, scratch_operands = 0 : i64, tpu.core_type = #tpu.core_type<tc>, window_params = [{transform_indices = @transform_0, window_bounds = array<i64: 16, 128>}, {transform_indices = @transform_1, window_bounds = array<i64: 16, 128>}, {transform_indices = @transform_2, window_bounds = array<i64: 1, 3, 8, 128>}]} {
    %c0_i32 = arith.constant 0 : i32
    %0 = arith.cmpi eq, %arg1, %c0_i32 : i32
    %1 = arith.extui %0 : i1 to i32
    %c0_i32_0 = arith.constant 0 : i32
    %2 = arith.cmpi ne, %1, %c0_i32_0 : i32
    scf.if %2 {
      %cst_31 = arith.constant 0.000000e+00 : f32
      %50 = vector.broadcast %cst_31 : f32 to vector<1x3x8x128xf32>
      %c0_32 = arith.constant 0 : index
      %c0_33 = arith.constant 0 : index
      %c0_34 = arith.constant 0 : index
      %c0_35 = arith.constant 0 : index
      %51 = vector.load %arg4[%c0_32, %c0_33, %c0_34, %c0_35] : memref<1x3x8x128xf32, #tpu.memory_space<vmem>>, vector<1x3x8x128xf32>
      tpu.vector_store %arg4[%c0_32, %c0_33, %c0_34, %c0_35], %50 {strides = array<i32>} : memref<1x3x8x128xf32, #tpu.memory_space<vmem>>, vector<1x3x8x128xf32>,
    } else {
    }
    %cst = arith.constant 0.000000e+00 : f32
    %3 = vector.broadcast %cst : f32 to vector<8x128xf32>
    %c0_i32_1 = arith.constant 0 : i32
    %c16_i32 = arith.constant 16 : i32
    %4 = arith.muli %c0_i32_1, %c16_i32 : i32
    %5 = tpu.assume_multiple %4, 16 : i32
    %6 = arith.index_cast %5 : i32 to index
    %c0 = arith.constant 0 : index
    %7 = vector.load %arg2[%6, %c0] : memref<16x128xf32, #tpu.memory_space<vmem>>, vector<16x128xf32>
    %8 = arith.index_cast %5 : i32 to index
    %c0_2 = arith.constant 0 : index
    %9 = vector.load %arg3[%8, %c0_2] : memref<16x128xf32, #tpu.memory_space<vmem>>, vector<16x128xf32>
    %10 = math.log %7 : vector<16x128xf32>
    %cst_3 = arith.constant -1.000000e+02 : f32
    %11 = vector.broadcast %cst_3 : f32 to vector<16x128xf32>
    %12 = arith.maximumf %10, %11 : vector<16x128xf32>
    %cst_4 = arith.constant 1.000000e+00 : f32
    %13 = vector.broadcast %cst_4 : f32 to vector<16x128xf32>
    %14 = arith.subf %13, %7 : vector<16x128xf32>
    %15 = math.log %14 : vector<16x128xf32>
    %cst_5 = arith.constant -1.000000e+02 : f32
    %16 = vector.broadcast %cst_5 : f32 to vector<16x128xf32>
    %17 = arith.maximumf %15, %16 : vector<16x128xf32>
    %18 = arith.subf %12, %17 : vector<16x128xf32>
    %19 = arith.mulf %9, %18 : vector<16x128xf32>
    %20 = arith.addf %19, %17 : vector<16x128xf32>
    %21 = arith.mulf %7, %9 : vector<16x128xf32>
    %22 = vector.shape_cast %21 : vector<16x128xf32> to vector<2x8x128xf32>
    %cst_6 = arith.constant dense<0.000000e+00> : vector<8x128xf32>
    %23 = vector.multi_reduction <add>, %22, %cst_6 [0] : vector<2x8x128xf32> to vector<8x128xf32>
    %24 = arith.addf %7, %9 : vector<16x128xf32>
    %25 = vector.shape_cast %24 : vector<16x128xf32> to vector<2x8x128xf32>
    %cst_7 = arith.constant dense<0.000000e+00> : vector<8x128xf32>
    %26 = vector.multi_reduction <add>, %25, %cst_7 [0] : vector<2x8x128xf32> to vector<8x128xf32>
    %27 = vector.shape_cast %20 : vector<16x128xf32> to vector<2x8x128xf32>
    %cst_8 = arith.constant dense<0.000000e+00> : vector<8x128xf32>
    %28 = vector.multi_reduction <add>, %27, %cst_8 [0] : vector<2x8x128xf32> to vector<8x128xf32>
    %29 = arith.addf %3, %23 : vector<8x128xf32>
    %30 = arith.addf %3, %26 : vector<8x128xf32>
    %31 = arith.addf %3, %28 : vector<8x128xf32>
    %c1_i32 = arith.constant 1 : i32
    %c0_9 = arith.constant 0 : index
    %c0_10 = arith.constant 0 : index
    %c0_11 = arith.constant 0 : index
    %c0_12 = arith.constant 0 : index
    %32 = vector.load %arg4[%c0_9, %c0_10, %c0_11, %c0_12] : memref<1x3x8x128xf32, #tpu.memory_space<vmem>>, vector<1x1x8x128xf32>
    %33 = vector.shape_cast %32 : vector<1x1x8x128xf32> to vector<8x128xf32>
    %34 = arith.addf %33, %29 : vector<8x128xf32>
    %c0_13 = arith.constant 0 : index
    %c0_14 = arith.constant 0 : index
    %c0_15 = arith.constant 0 : index
    %c0_16 = arith.constant 0 : index
    %35 = vector.load %arg4[%c0_13, %c0_14, %c0_15, %c0_16] : memref<1x3x8x128xf32, #tpu.memory_space<vmem>>, vector<1x1x8x128xf32>
    %36 = vector.shape_cast %35 : vector<1x1x8x128xf32> to vector<8x128xf32>
    %37 = vector.shape_cast %34 : vector<8x128xf32> to vector<1x1x8x128xf32>
    tpu.vector_store %arg4[%c0_13, %c0_14, %c0_15, %c0_16], %37 {strides = array<i32>} : memref<1x3x8x128xf32, #tpu.memory_space<vmem>>, vector<1x1x8x128xf32>,
    %c0_17 = arith.constant 0 : index
    %c1 = arith.constant 1 : index
    %c0_18 = arith.constant 0 : index
    %c0_19 = arith.constant 0 : index
    %38 = vector.load %arg4[%c0_17, %c1, %c0_18, %c0_19] : memref<1x3x8x128xf32, #tpu.memory_space<vmem>>, vector<1x1x8x128xf32>
    %39 = vector.shape_cast %38 : vector<1x1x8x128xf32> to vector<8x128xf32>
    %40 = arith.addf %39, %30 : vector<8x128xf32>
    %c0_20 = arith.constant 0 : index
    %c1_21 = arith.constant 1 : index
    %c0_22 = arith.constant 0 : index
    %c0_23 = arith.constant 0 : index
    %41 = vector.load %arg4[%c0_20, %c1_21, %c0_22, %c0_23] : memref<1x3x8x128xf32, #tpu.memory_space<vmem>>, vector<1x1x8x128xf32>
    %42 = vector.shape_cast %41 : vector<1x1x8x128xf32> to vector<8x128xf32>
    %43 = vector.shape_cast %40 : vector<8x128xf32> to vector<1x1x8x128xf32>
    tpu.vector_store %arg4[%c0_20, %c1_21, %c0_22, %c0_23], %43 {strides = array<i32>} : memref<1x3x8x128xf32, #tpu.memory_space<vmem>>, vector<1x1x8x128xf32>,
    %c0_24 = arith.constant 0 : index
    %c2 = arith.constant 2 : index
    %c0_25 = arith.constant 0 : index
    %c0_26 = arith.constant 0 : index
    %44 = vector.load %arg4[%c0_24, %c2, %c0_25, %c0_26] : memref<1x3x8x128xf32, #tpu.memory_space<vmem>>, vector<1x1x8x128xf32>
    %45 = vector.shape_cast %44 : vector<1x1x8x128xf32> to vector<8x128xf32>
    %46 = arith.addf %45, %31 : vector<8x128xf32>
    %c0_27 = arith.constant 0 : index
    %c2_28 = arith.constant 2 : index
    %c0_29 = arith.constant 0 : index
    %c0_30 = arith.constant 0 : index
    %47 = vector.load %arg4[%c0_27, %c2_28, %c0_29, %c0_30] : memref<1x3x8x128xf32, #tpu.memory_space<vmem>>, vector<1x1x8x128xf32>
    %48 = vector.shape_cast %47 : vector<1x1x8x128xf32> to vector<8x128xf32>
    %49 = vector.shape_cast %46 : vector<8x128xf32> to vector<1x1x8x128xf32>
    tpu.vector_store %arg4[%c0_27, %c2_28, %c0_29, %c0_30], %49 {strides = array<i32>} : memref<1x3x8x128xf32, #tpu.memory_space<vmem>>, vector<1x1x8x128xf32>,
    return
  }
  func.func @transform_0(%arg0: i32, %arg1: i32) -> (i32, i32) {
    %c1_i32 = arith.constant 1 : i32
    %0 = arith.muli %arg0, %c1_i32 : i32
    %1 = arith.addi %0, %arg1 : i32
    %c0_i32 = arith.constant 0 : i32
    %2 = arith.minsi %1, %c0_i32 : i32
    %c0_i32_0 = arith.constant 0 : i32
    %c0_i32_1 = arith.constant 0 : i32
    return %2, %c0_i32_0 : i32, i32
  }
  func.func @transform_1(%arg0: i32, %arg1: i32) -> (i32, i32) {
    %c1_i32 = arith.constant 1 : i32
    %0 = arith.muli %arg0, %c1_i32 : i32
    %1 = arith.addi %0, %arg1 : i32
    %c0_i32 = arith.constant 0 : i32
    %2 = arith.minsi %1, %c0_i32 : i32
    %c0_i32_0 = arith.constant 0 : i32
    %c0_i32_1 = arith.constant 0 : i32
    return %2, %c0_i32_0 : i32, i32
  }
  func.func @transform_2(%arg0: i32, %arg1: i32) -> (i32, i32, i32, i32) {
    %c0_i32 = arith.constant 0 : i32
    %c0_i32_0 = arith.constant 0 : i32
    %c0_i32_1 = arith.constant 0 : i32
    %c0_i32_2 = arith.constant 0 : i32
    return %arg0, %c0_i32, %c0_i32_0, %c0_i32_1 : i32, i32, i32, i32
  }
}

</mosaic_0001>

<llo_original>
// kernel: tpu_custom_call.1
$region0: #{tpu_custom_call.1}
  #allocation0 [shape = 'u32[]', space=smem, size = 0x4, offset = 0x4, fixed_abs, tag = 'smem constant byte address 0x4 - core index']
  #allocation1 [shape = 'u32[72,128]{1,0:T(1,128)}', space=vmem, size = 0x9000, scoped, tag = 'internal scratch']
  %s0 = inlined_call_operand.hbm [shape: f32[16,128], index: 0, kind: input, shape index: {}]
  %s1 = inlined_call_operand.hbm [shape: f32[16,128], index: 1, kind: input, shape index: {}]
  %s2 = inlined_call_operand.hbm [shape: f32[1,3,8,128], index: 2, kind: output, shape index: {}]
  %s3 = sld [smem:[#allocation0]]
  $region30: #{tpu_custom_call.1} parent=0
    _
  %s5 = ssub.s32 1, %s3
  %s6 = scalar_select 0, %s5, %s3
  $region1: #{tpu_custom_call.1} parent=0
    #allocation2 [shape = 'u8[8192]{0}', space=vmem, size = 0x2000, scoped, tag = 'input window, operand 0, single buffered']
    #allocation3 [shape = 's32[1]{0}', space=sflag, size = 0x4, scoped, tag = 'scoped memory for tpu_custom_call.1']
    #allocation4 [shape = 's32[1]{0}', space=sflag, size = 0x4, scoped, tag = 'scoped memory for tpu_custom_call.1']
    #allocation5 [shape = 'u8[8192]{0}', space=vmem, size = 0x2000, scoped, tag = 'input window, operand 1, single buffered']
    #allocation6 [shape = 's32[1]{0}', space=sflag, size = 0x4, scoped, tag = 'scoped memory for tpu_custom_call.1']
    #allocation7 [shape = 'u8[12288]{0}', space=vmem, size = 0x3000, scoped, tag = 'output window, operand 0, single buffered']
    %7 = vsyncpa [#allocation3], 0
    %8 = vsyncpa [#allocation6], 0
    %9 = vsyncpa [#allocation4], 0
    // Predicated region
    $region2: #{tpu_custom_call.1} parent=1 // pred_check
      _
    $region3: #{tpu_custom_call.1} parent=1 // pred_check_branch
      %11 = sbr.rel (0) target = $region5
    $region4: #{tpu_custom_call.1} parent=1 // pred_region
      %s12 = sadd.s32 0, 0
      %p13 = scmp.lt.s32.totalorder %s12, 0
      %s14 = scalar_select %p13, %s12, 0
      %s15 = smul.u32 2, %s14
      %17 = vsyncadd [#allocation3], 0
      %s18 = smul.addr %s15, 8
      %s19 = scalar_lea.hbm %s0, %s18
      %s20 = sshll.u32 %s19, 4
      %s21 = int_to_ptr.hbm [resolvable:$true] %s20
      %s22 = sshll.u32 [#allocation2], 4
      %s23 = int_to_ptr.vmem [resolvable:$true] %s22
      %28 = dma.hbm_to_vmem [thread:$0]  %s21, 256, %s23, [#allocation3], 128, 128, 8
    $region5: #{tpu_custom_call.1} parent=1 // pred_fallthru
      _
    // Predicated region
    $region6: #{tpu_custom_call.1} parent=1 // pred_check
      _
    $region7: #{tpu_custom_call.1} parent=1 // pred_check_branch
      %30 = sbr.rel (0) target = $region9
    $region8: #{tpu_custom_call.1} parent=1 // pred_region
      %s31 = sadd.s32 0, 0
      %p32 = scmp.lt.s32.totalorder %s31, 0
      %s33 = scalar_select %p32, %s31, 0
      %s34 = smul.u32 2, %s33
      %36 = vsyncadd [#allocation6], 0
      %s37 = smul.addr %s34, 8
      %s38 = scalar_lea.hbm %s1, %s37
      %s39 = sshll.u32 %s38, 4
      %s40 = int_to_ptr.hbm [resolvable:$true] %s39
      %s41 = sshll.u32 [#allocation5], 4
      %s42 = int_to_ptr.vmem [resolvable:$true] %s41
      %47 = dma.hbm_to_vmem [thread:$0]  %s40, 256, %s42, [#allocation6], 128, 128, 8
    $region9: #{tpu_custom_call.1} parent=1 // pred_fallthru
      _
    // Predicated region
    $region10: #{tpu_custom_call.1} parent=1 // pred_check
      _
    $region11: #{tpu_custom_call.1} parent=1 // pred_check_branch
      %49 = sbr.rel (0) target = $region13
    $region12: #{tpu_custom_call.1} parent=1 // pred_region
      %51 = dma.done [#allocation3], 256
    $region13: #{tpu_custom_call.1} parent=1 // pred_fallthru
      _
    // Predicated region
    $region14: #{tpu_custom_call.1} parent=1 // pred_check
      _
    $region15: #{tpu_custom_call.1} parent=1 // pred_check_branch
      %53 = sbr.rel (0) target = $region17
    $region16: #{tpu_custom_call.1} parent=1 // pred_region
      %55 = dma.done [#allocation6], 256
    $region17: #{tpu_custom_call.1} parent=1 // pred_fallthru
      _
    %s56 = sadd.s32 0, 0
    %p57 = scmp.lt.s32.totalorder %s56, 0
    %s58 = scalar_select %p57, %s56, 0
    %s59 = smul.u32 2, %s58
    %s60 = sadd.s32 0, 0
    %p61 = scmp.lt.s32.totalorder %s60, 0
    %s62 = scalar_select %p61, %s60, 0
    %s63 = smul.u32 2, %s62
    %p64 = scmp.eq.s32.totalorder 0, 0
    // Predicated region
    $region18: #{tpu_custom_call.1} parent=1 // pred_check
      %p65 = pneg %p64
    $region19: #{tpu_custom_call.1} parent=1 // pred_check_branch
      %67 = sbr.rel (%p65) target = $region21
    $region20: #{tpu_custom_call.1} parent=1 // pred_region
      %68 = vst [vmem:[#allocation7] sm:$0xff] 0.0
      %69 = vst [vmem:[#allocation7 + $0x8] sm:$0xff] 0.0
      %70 = vst [vmem:[#allocation7 + $0x10] sm:$0xff] 0.0
    $region21: #{tpu_custom_call.1} parent=1 // pred_fallthru
      _
    %v71 = vld [vmem:[#allocation2] sm:$0xff]
    %v72 = vld [vmem:[#allocation2 + $0x8] sm:$0xff]
    %v73 = vld [vmem:[#allocation5] sm:$0xff]
    %v74 = vld [vmem:[#allocation5 + $0x8] sm:$0xff]
    %v75 = vlog2.pop %v71
    %v76 = vmul.f32 %v75, 0.6931472
    %v77 = vlog2.pop %v72
    %v78 = vmul.f32 %v77, 0.6931472
    %v79 = vmax.f32 %v76, -100.0
    %v80 = vmax.f32 %v78, -100.0
    %v81 = vsub.f32 1.0, %v71
    %v82 = vsub.f32 1.0, %v72
    %v83 = vlog2.pop %v81
    %v84 = vmul.f32 %v83, 0.6931472
    %v85 = vlog2.pop %v82
    %v86 = vmul.f32 %v85, 0.6931472
    %v87 = vmax.f32 %v84, -100.0
    %v88 = vmax.f32 %v86, -100.0
    %v89 = vsub.f32 %v79, %v87
    %v90 = vsub.f32 %v80, %v88
    %v91 = vmul.f32 %v73, %v89
    %v92 = vmul.f32 %v74, %v90
    %v93 = vadd.f32 %v91, %v87
    %v94 = vadd.f32 %v92, %v88
    %v95 = vmul.f32 %v71, %v73
    %v96 = vmul.f32 %v72, %v74
    %v97 = vadd.f32 %v95, %v96
    %v98 = vadd.f32 %v71, %v73
    %v99 = vadd.f32 %v72, %v74
    %v100 = vadd.f32 %v98, %v99
    %v101 = vadd.f32 %v93, %v94
    %v102 = vadd.f32 %v97, 0.0
    %v103 = vadd.f32 %v100, 0.0
    %v104 = vadd.f32 %v101, 0.0
    %v105 = vld [vmem:[#allocation7] sm:$0xff]
    %v106 = vadd.f32 %v105, %v102
    %107 = vst [vmem:[#allocation7] sm:$0xff] %v106
    %s108 = scalar_lea.vmem [#allocation7], 8
    %v109 = vld [vmem:[%s108] sm:$0xff]
    %v110 = vadd.f32 %v109, %v103
    %111 = vst [vmem:[%s108] sm:$0xff] %v110
    %s112 = scalar_lea.vmem [#allocation7], 16
    %v113 = vld [vmem:[%s112] sm:$0xff]
    %v114 = vadd.f32 %v113, %v104
    %115 = vst [vmem:[%s112] sm:$0xff] %v114
    // Predicated region
    $region22: #{tpu_custom_call.1} parent=1 // pred_check
      _
    $region23: #{tpu_custom_call.1} parent=1 // pred_check_branch
      %117 = sbr.rel (0) target = $region25
    $region24: #{tpu_custom_call.1} parent=1 // pred_region
      %119 = vsyncadd [#allocation4], 0
      %s120 = sshll.u32 [#allocation7], 4
      %s121 = int_to_ptr.vmem [resolvable:$true] %s120
      %s122 = sshll.u32 %s2, 4
      %s123 = int_to_ptr.hbm [resolvable:$true] %s122
      %128 = dma.vmem_to_hbm [thread:$0]  %s121, 384, %s123, [#allocation4], 128, 128, 8
    $region25: #{tpu_custom_call.1} parent=1 // pred_fallthru
      _
    // Predicated region
    $region26: #{tpu_custom_call.1} parent=1 // pred_check
      _
    $region27: #{tpu_custom_call.1} parent=1 // pred_check_branch
      %130 = sbr.rel (0) target = $region29
    $region28: #{tpu_custom_call.1} parent=1 // pred_region
      %132 = dma.done [#allocation4], 384
    $region29: #{tpu_custom_call.1} parent=1 // pred_fallthru
      _
    %133 = vsyncpa [#allocation3], 1
    %134 = vsyncpa [#allocation6], 1
    %135 = vsyncpa [#allocation4], 1

</llo_original>
